<compile_context>
chip_gen: v7x
topology: tpu7x:2x2x1
jax: 0.10.0
libtpu: 0.0.40
codegen_flags: <defaults>
</compile_context>

<pallas_src>
import functools

import jax
import jax.numpy as jnp
from jax.experimental import pallas as pl
from jax.experimental.pallas import tpu as pltpu


def _decode_kernel(boxes_ref, aux_ref, out_ref, *, scale0, scale1):
    # boxes_ref: (B, TN)  flattened raw boxes; TN is a multiple of 4.
    # aux_ref:   (2, TN)  f32: row 0 = anchor w/h per slot (w,h,w,h,...),
    #                          row 1 = anchor cx/cy per slot (cx,cy,0,0,...).
    raw = boxes_ref[...].astype(jnp.float32)            # (B, TN)
    mult = aux_ref[0:1, :]                               # (1, TN)
    add = aux_ref[1:2, :]                                # (1, TN)

    # Flat coordinate index modulo 4.  Tile starts are multiples of TN (itself
    # a multiple of 4), so the tile-local lane index has the same residue as
    # the global flattened index.
    lane = jax.lax.broadcasted_iota(jnp.int32, (1, raw.shape[1]), 1)
    is_xy = (lane & 3) < 2                                # (1, TN)

    xy = raw * mult * scale0 + add                        # VPU mul/add
    wh = mult * jnp.exp(raw * scale1)                     # EUP exp (free slot)
    out_ref[...] = jnp.where(is_xy, xy, wh).astype(out_ref.dtype)


def _round_up(x, m):
    return (x + m - 1) // m * m


def faceboxes_decode(scores, boxes, anchors, scale):
    """scores: [B, n_boxes, n_classes], boxes: [B, n_boxes, 4], anchors: [n_boxes, 4]."""
    B, N, C = scores.shape
    assert boxes.shape == (B, N, 4)
    assert anchors.shape == (N, 4)

    # NOTE: scale is a constructor constant in the PyTorch module, so it is a
    # concrete Python value here.  If it ever needs to be traced, pass it as a
    # (1, 1) SMEM scalar input instead of baking it into the kernel.
    scale0 = float(scale[0])
    scale1 = float(scale[1])

    # scores[..., -1:] is a pure slice -- no kernel, no transpose, no extra DMA.
    scores_out = scores[..., C - 1:C]

    # ------------- box decode via Pallas on the transpose-free layout -------
    F = 4 * N

    # Lane tile: keep the double-buffered f32 working set small on every
    # generation: per step ~ 2(dbuf) * 4B * TN * (2*B [boxes in+out] + 2 [aux]).
    budget_bytes = 8 * 1024 * 1024
    max_tile = budget_bytes // (8 * (2 * B + 2))
    max_tile = max(512, min(32768, (max_tile // 128) * 128))

    if F <= max_tile:
        TN, F_pad = F, F          # full-extent block (allowed even if not %128)
    else:
        TN = max_tile             # multiple of 128 -> lane-dense, unmasked stores
        F_pad = _round_up(F, TN)

    boxes_flat = boxes.reshape(B, F)                       # free row-major view

    # Tiny [N,4] -> [2,4N] anchor preprocessing (constant per model).
    a_wh = anchors[:, 2:4].astype(jnp.float32)
    a_xy = anchors[:, 0:2].astype(jnp.float32)
    mult_flat = jnp.concatenate([a_wh, a_wh], axis=1).reshape(1, F)          # w,h,w,h
    add_flat = jnp.concatenate([a_xy, jnp.zeros_like(a_xy)], axis=1).reshape(1, F)
    aux = jnp.concatenate([mult_flat, add_flat], axis=0)                     # (2, F)

    if F_pad != F:
        boxes_flat = jnp.pad(boxes_flat, ((0, 0), (0, F_pad - F)))
        aux = jnp.pad(aux, ((0, 0), (0, F_pad - F)))

    kernel = functools.partial(_decode_kernel, scale0=scale0, scale1=scale1)

    out_flat = pl.pallas_call(
        kernel,
        out_shape=jax.ShapeDtypeStruct((B, F_pad), boxes.dtype),
        grid=(F_pad // TN,),
        in_specs=[
            pl.BlockSpec((B, TN), lambda n: (0, n)),   # raw boxes tile
            pl.BlockSpec((2, TN), lambda n: (0, n)),   # anchor aux tile
        ],
        out_specs=pl.BlockSpec((B, TN), lambda n: (0, n)),
        compiler_params=pltpu.CompilerParams(
            dimension_semantics=("parallel",)),
    )(boxes_flat, aux)

    boxes_out = out_flat[:, :F].reshape(B, N, 4)           # free view back
    return scores_out, boxes_out


def faceboxes_decode_ref(scores, boxes, anchors, scale):
    """Pure-JAX reference matching the PyTorch module exactly."""
    a = anchors[None, ...]                                  # [1, N, 4]
    xy = boxes[..., :2] * a[..., 2:] * scale[0] + a[..., :2]
    wh = a[..., 2:] * jnp.exp(boxes[..., 2:] * scale[1])
    return scores[..., -1:], jnp.concatenate([xy, wh], axis=-1)


if __name__ == "__main__":
    # Deterministic synthetic setup (constructor: n_classes, n_coords, anchors, scale).
    B = 2
    n_boxes = 128
    n_classes = 2
    n_coords = 4
    scale = (0.1, 0.2)

    key = jax.random.PRNGKey(0)
    k_sc, k_bx, k_acen, k_asz = jax.random.split(key, 4)

    scores = jax.random.normal(k_sc, (B, n_boxes, n_classes), dtype=jnp.float32)
    boxes = jax.random.normal(k_bx, (B, n_boxes, n_coords), dtype=jnp.float32)
    # anchors: [n_boxes, 4] = (cx, cy, w, h); keep w/h positive as real anchors are.
    anchor_centers = jax.random.uniform(k_acen, (n_boxes, 2), dtype=jnp.float32)
    anchor_sizes = jax.random.uniform(
        k_asz, (n_boxes, 2), dtype=jnp.float32, minval=0.05, maxval=0.5)
    anchors = jnp.concatenate([anchor_centers, anchor_sizes], axis=-1)

    scores_out, boxes_out = faceboxes_decode(scores, boxes, anchors, scale)
    jax.block_until_ready((scores_out, boxes_out))

    ref_scores, ref_boxes = faceboxes_decode_ref(scores, boxes, anchors, scale)

    assert scores_out.shape == (B, n_boxes, 1)
    assert boxes_out.shape == (B, n_boxes, 4)
    assert jnp.allclose(scores_out, ref_scores, atol=1e-6, rtol=1e-6)
    assert jnp.allclose(boxes_out, ref_boxes, atol=1e-5, rtol=1e-5)

    print("KERNEL_OK")
</pallas_src>

<mosaic_0001>
module attributes {stable_mosaic.version = 11 : i64} {
  func.func @_decode_kernel(%arg0: i32, %arg1: memref<2x512xf32, #tpu.memory_space<vmem>>, %arg2: memref<2x512xf32, #tpu.memory_space<vmem>>, %arg3: memref<2x512xf32, #tpu.memory_space<vmem>>) attributes {dimension_semantics = [#tpu.dimension_semantics<parallel>], iteration_bounds = array<i64: 1>, scalar_prefetch = 0 : i64, scratch_operands = 0 : i64, tpu.core_type = #tpu.core_type<tc>, window_params = [{transform_indices = @transform_0, window_bounds = array<i64: 2, 512>}, {transform_indices = @transform_1, window_bounds = array<i64: 2, 512>}, {transform_indices = @transform_2, window_bounds = array<i64: 2, 512>}]} {
    %c0 = arith.constant 0 : index
    %c0_0 = arith.constant 0 : index
    %0 = vector.load %arg1[%c0, %c0_0] : memref<2x512xf32, #tpu.memory_space<vmem>>, vector<2x512xf32>
    %c0_1 = arith.constant 0 : index
    %c0_2 = arith.constant 0 : index
    %1 = vector.load %arg2[%c0_1, %c0_2] : memref<2x512xf32, #tpu.memory_space<vmem>>, vector<1x512xf32>
    %c1 = arith.constant 1 : index
    %c0_3 = arith.constant 0 : index
    %2 = vector.load %arg2[%c1, %c0_3] : memref<2x512xf32, #tpu.memory_space<vmem>>, vector<1x512xf32>
    %3 = tpu.iota {dimensions = array<i32: 1>} : vector<1x512xi32>
    %c3_i32 = arith.constant 3 : i32
    %4 = vector.broadcast %c3_i32 : i32 to vector<1x512xi32>
    %5 = arith.andi %3, %4 : vector<1x512xi32>
    %c2_i32 = arith.constant 2 : i32
    %6 = vector.broadcast %c2_i32 : i32 to vector<1x512xi32>
    %7 = arith.cmpi slt, %5, %6 : vector<1x512xi32>
    %8 = vector.broadcast %1 : vector<1x512xf32> to vector<2x512xf32>
    %9 = arith.mulf %0, %8 : vector<2x512xf32>
    %cst = arith.constant 1.000000e-01 : f32
    %10 = vector.broadcast %cst : f32 to vector<2x512xf32>
    %11 = arith.mulf %9, %10 : vector<2x512xf32>
    %12 = vector.broadcast %2 : vector<1x512xf32> to vector<2x512xf32>
    %13 = arith.addf %11, %12 : vector<2x512xf32>
    %cst_4 = arith.constant 2.000000e-01 : f32
    %14 = vector.broadcast %cst_4 : f32 to vector<2x512xf32>
    %15 = arith.mulf %0, %14 : vector<2x512xf32>
    %16 = math.exp %15 : vector<2x512xf32>
    %17 = vector.broadcast %1 : vector<1x512xf32> to vector<2x512xf32>
    %18 = arith.mulf %17, %16 : vector<2x512xf32>
    %19 = vector.shape_cast %7 : vector<1x512xi1> to vector<1x512xi1>
    %20 = vector.broadcast %19 : vector<1x512xi1> to vector<2x512xi1>
    %21 = arith.select %20, %13, %18 : vector<2x512xi1>, vector<2x512xf32>
    %c0_5 = arith.constant 0 : index
    %c0_6 = arith.constant 0 : index
    %22 = vector.load %arg3[%c0_5, %c0_6] : memref<2x512xf32, #tpu.memory_space<vmem>>, vector<2x512xf32>
    tpu.vector_store %arg3[%c0_5, %c0_6], %21 {strides = array<i32>} : memref<2x512xf32, #tpu.memory_space<vmem>>, vector<2x512xf32>,
    return
  }
  func.func @transform_0(%arg0: i32) -> (i32, i32) {
    %c0_i32 = arith.constant 0 : i32
    %c0_i32_0 = arith.constant 0 : i32
    return %c0_i32, %arg0 : i32, i32
  }
  func.func @transform_1(%arg0: i32) -> (i32, i32) {
    %c0_i32 = arith.constant 0 : i32
    %c0_i32_0 = arith.constant 0 : i32
    return %c0_i32, %arg0 : i32, i32
  }
  func.func @transform_2(%arg0: i32) -> (i32, i32) {
    %c0_i32 = arith.constant 0 : i32
    %c0_i32_0 = arith.constant 0 : i32
    return %c0_i32, %arg0 : i32, i32
  }
}

</mosaic_0001>

<llo_original>
// kernel: tpu_custom_call.1
$region0: #{tpu_custom_call.1}
  #allocation0 [shape = 'u32[]', space=smem, size = 0x4, offset = 0x4, fixed_abs, tag = 'smem constant byte address 0x4 - core index']
  #allocation1 [shape = 'u32[144,128]{1,0:T(1,128)}', space=vmem, size = 0x12000, scoped, tag = 'internal scratch']
  %s0 = inlined_call_operand.hbm [shape: f32[2,512], index: 0, kind: input, shape index: {}]
  %s1 = inlined_call_operand.hbm [shape: f32[2,512], index: 1, kind: input, shape index: {}]
  %s2 = inlined_call_operand.hbm [shape: f32[2,512], index: 2, kind: output, shape index: {}]
  %s3 = sld [smem:[#allocation0]]
  $region26: #{tpu_custom_call.1} parent=0
    _
  %s5 = ssub.s32 1, %s3
  %s6 = scalar_select 0, %s5, %s3
  $region1: #{tpu_custom_call.1} parent=0
    #allocation2 [shape = 'u8[4096]{0}', space=vmem, size = 0x1000, scoped, tag = 'input window, operand 0, single buffered']
    #allocation3 [shape = 's32[1]{0}', space=sflag, size = 0x4, scoped, tag = 'scoped memory for tpu_custom_call.1']
    #allocation4 [shape = 's32[1]{0}', space=sflag, size = 0x4, scoped, tag = 'scoped memory for tpu_custom_call.1']
    #allocation5 [shape = 'u8[4096]{0}', space=vmem, size = 0x1000, scoped, tag = 'input window, operand 1, single buffered']
    #allocation6 [shape = 's32[1]{0}', space=sflag, size = 0x4, scoped, tag = 'scoped memory for tpu_custom_call.1']
    #allocation7 [shape = 'u8[4096]{0}', space=vmem, size = 0x1000, scoped, tag = 'output window, operand 0, single buffered']
    %7 = vsyncpa [#allocation3], 0
    %8 = vsyncpa [#allocation6], 0
    %9 = vsyncpa [#allocation4], 0
    // Predicated region
    $region2: #{tpu_custom_call.1} parent=1 // pred_check
      _
    $region3: #{tpu_custom_call.1} parent=1 // pred_check_branch
      %11 = sbr.rel (0) target = $region5
    $region4: #{tpu_custom_call.1} parent=1 // pred_region
      %s13 = ssub.s32 128, 128
      %14 = vsyncadd [#allocation3], %s13
      %s16 = sshll.u32 [#allocation2], 4
      %s17 = int_to_ptr.vmem [resolvable:$true] %s16
      %19 = dma.hbm_to_vmem [thread:$0]  %s0, 128, %s17, [#allocation3]
    $region5: #{tpu_custom_call.1} parent=1 // pred_fallthru
      _
    // Predicated region
    $region6: #{tpu_custom_call.1} parent=1 // pred_check
      _
    $region7: #{tpu_custom_call.1} parent=1 // pred_check_branch
      %21 = sbr.rel (0) target = $region9
    $region8: #{tpu_custom_call.1} parent=1 // pred_region
      %s23 = ssub.s32 128, 128
      %24 = vsyncadd [#allocation6], %s23
      %s26 = sshll.u32 [#allocation5], 4
      %s27 = int_to_ptr.vmem [resolvable:$true] %s26
      %29 = dma.hbm_to_vmem [thread:$0]  %s1, 128, %s27, [#allocation6]
    $region9: #{tpu_custom_call.1} parent=1 // pred_fallthru
      _
    // Predicated region
    $region10: #{tpu_custom_call.1} parent=1 // pred_check
      _
    $region11: #{tpu_custom_call.1} parent=1 // pred_check_branch
      %31 = sbr.rel (0) target = $region13
    $region12: #{tpu_custom_call.1} parent=1 // pred_region
      %32 = dma.done [#allocation3], 128
    $region13: #{tpu_custom_call.1} parent=1 // pred_fallthru
      _
    // Predicated region
    $region14: #{tpu_custom_call.1} parent=1 // pred_check
      _
    $region15: #{tpu_custom_call.1} parent=1 // pred_check_branch
      %34 = sbr.rel (0) target = $region17
    $region16: #{tpu_custom_call.1} parent=1 // pred_region
      %35 = dma.done [#allocation6], 128
    $region17: #{tpu_custom_call.1} parent=1 // pred_fallthru
      _
    %v36 = vld [vmem:[#allocation2] sm:$0xff]
    %v37 = vld [vmem:[#allocation5] ss:$2 sm:$0xf]
    %s38 = scalar_lea.vmem [#allocation5], 1
    %v39 = vld [vmem:[%s38] ss:$2 sm:$0xf]
    %v40 = vlaneseq
    %v41 = vand.u32 %v40, 127
    %v42 = vadd.s32 %v41, 128
    %v43 = vadd.s32 %v41, 256
    %v44 = vadd.s32 %v41, 384
    %v45 = vand.u32 %v41, 3
    %v46 = vand.u32 %v42, 3
    %v47 = vand.u32 %v43, 3
    %v48 = vand.u32 %v44, 3
    %vm49 = vcmp.lt.s32.totalorder %v45, 2
    %vm50 = vcmp.lt.s32.totalorder %v46, 2
    %vm51 = vcmp.lt.s32.totalorder %v47, 2
    %vm52 = vcmp.lt.s32.totalorder %v48, 2
    %v54 = vlaneseq
    %v55 = vshrl.u32 %v54, 7
    %v56 = vsub.s32 0, %v55
    %v57 = vrot.slane %v37, %v56
    %v58 = vlaneseq
    %v59 = vshrl.u32 %v58, 7
    %v60 = vsub.s32 1, %v59
    %v61 = vrot.slane %v37, %v60
    %v62 = vlaneseq
    %v63 = vshrl.u32 %v62, 7
    %v64 = vsub.s32 2, %v63
    %v65 = vrot.slane %v37, %v64
    %v66 = vlaneseq
    %v67 = vshrl.u32 %v66, 7
    %v68 = vsub.s32 3, %v67
    %v69 = vrot.slane %v37, %v68
    %v74 = vcombine.low %v57, %v61
    %v75 = vcombine.low %v65, %v69
    %v77 = vunpack.c.l.s4 1983009808
    %v78 = vunpack.c.0.s8 %v77
    %v79 = vlaneseq
    %v80 = vshrl.u32 %v79, 7
    %v81 = vsub.s32 %v78, %v80
    %v82 = vrot.slane %v74, %v81
    %v84 = vunpack.c.l.s4 1983009808
    %v85 = vunpack.c.0.s8 %v84
    %v86 = vlaneseq
    %v87 = vshrl.u32 %v86, 7
    %v88 = vsub.s32 %v85, %v87
    %v89 = vrot.slane %v75, %v88
    %v90 = vcombine.low %v82, %v89
    %v92 = vmul.f32 %v36, %v90
    %v93 = vmul.f32 %v92, 0.1
    %v95 = vlaneseq
    %v96 = vshrl.u32 %v95, 7
    %v97 = vsub.s32 0, %v96
    %v98 = vrot.slane %v39, %v97
    %v99 = vlaneseq
    %v100 = vshrl.u32 %v99, 7
    %v101 = vsub.s32 1, %v100
    %v102 = vrot.slane %v39, %v101
    %v103 = vlaneseq
    %v104 = vshrl.u32 %v103, 7
    %v105 = vsub.s32 2, %v104
    %v106 = vrot.slane %v39, %v105
    %v107 = vlaneseq
    %v108 = vshrl.u32 %v107, 7
    %v109 = vsub.s32 3, %v108
    %v110 = vrot.slane %v39, %v109
    %v111 = vcombine.low %v98, %v102
    %v112 = vcombine.low %v106, %v110
    %v114 = vunpack.c.l.s4 1983009808
    %v115 = vunpack.c.0.s8 %v114
    %v116 = vlaneseq
    %v117 = vshrl.u32 %v116, 7
    %v118 = vsub.s32 %v115, %v117
    %v119 = vrot.slane %v111, %v118
    %v121 = vunpack.c.l.s4 1983009808
    %v122 = vunpack.c.0.s8 %v121
    %v123 = vlaneseq
    %v124 = vshrl.u32 %v123, 7
    %v125 = vsub.s32 %v122, %v124
    %v126 = vrot.slane %v112, %v125
    %v127 = vcombine.low %v119, %v126
    %v129 = vadd.f32 %v93, %v127
    %v130 = vmul.f32 %v36, 0.2
    %v131 = vmul.f32 %v130, 1.442695
    %v132 = vpow.pop %v131
    %v134 = vcombine.high %v132, %v132
    %v136 = vunpack.c.l.s4 1983009808
    %v137 = vunpack.c.0.s8 %v136
    %v138 = vlaneseq
    %v139 = vshrl.u32 %v138, 7
    %v140 = vsub.s32 %v137, %v139
    %v141 = vrot.slane %v132, %v140
    %v143 = vunpack.c.l.s4 1983009808
    %v144 = vunpack.c.0.s8 %v143
    %v145 = vlaneseq
    %v146 = vshrl.u32 %v145, 7
    %v147 = vsub.s32 %v144, %v146
    %v148 = vrot.slane %v134, %v147
    %v149 = vcombine.high %v141, %v141
    %v150 = vcombine.high %v148, %v148
    %v155 = vmul.f32 %v57, %v141
    %v156 = vmul.f32 %v61, %v149
    %v157 = vmul.f32 %v65, %v148
    %v158 = vmul.f32 %v69, %v150
    %v159 = vsel %vm49, 1, 0
    %v160 = vsel %vm50, 1, 0
    %v161 = vsel %vm51, 1, 0
    %v162 = vsel %vm52, 1, 0
    %vm163 = vcmp.eq.s32.totalorder %v159, 1
    %vm164 = vcmp.eq.s32.totalorder %v160, 1
    %vm165 = vcmp.eq.s32.totalorder %v161, 1
    %vm166 = vcmp.eq.s32.totalorder %v162, 1
    %v168 = vcombine.high %v129, %v129
    %v170 = vunpack.c.l.s4 1983009808
    %v171 = vunpack.c.0.s8 %v170
    %v172 = vlaneseq
    %v173 = vshrl.u32 %v172, 7
    %v174 = vsub.s32 %v171, %v173
    %v175 = vrot.slane %v129, %v174
    %v177 = vunpack.c.l.s4 1983009808
    %v178 = vunpack.c.0.s8 %v177
    %v179 = vlaneseq
    %v180 = vshrl.u32 %v179, 7
    %v181 = vsub.s32 %v178, %v180
    %v182 = vrot.slane %v168, %v181
    %v183 = vcombine.high %v175, %v175
    %v184 = vcombine.high %v182, %v182
    %v189 = vsel %vm163, %v175, %v155
    %v190 = vsel %vm164, %v183, %v156
    %v191 = vsel %vm165, %v182, %v157
    %v192 = vsel %vm166, %v184, %v158
    %v197 = vcombine.low %v189, %v190
    %v198 = vcombine.low %v191, %v192
    %v200 = vunpack.c.l.s4 1983009808
    %v201 = vunpack.c.0.s8 %v200
    %v202 = vlaneseq
    %v203 = vshrl.u32 %v202, 7
    %v204 = vsub.s32 %v201, %v203
    %v205 = vrot.slane %v197, %v204
    %v207 = vunpack.c.l.s4 1983009808
    %v208 = vunpack.c.0.s8 %v207
    %v209 = vlaneseq
    %v210 = vshrl.u32 %v209, 7
    %v211 = vsub.s32 %v208, %v210
    %v212 = vrot.slane %v198, %v211
    %v213 = vcombine.low %v205, %v212
    %215 = vst [vmem:[#allocation7] sm:$0xff] %v213
    // Predicated region
    $region18: #{tpu_custom_call.1} parent=1 // pred_check
      _
    $region19: #{tpu_custom_call.1} parent=1 // pred_check_branch
      %217 = sbr.rel (0) target = $region21
    $region20: #{tpu_custom_call.1} parent=1 // pred_region
      %s219 = ssub.s32 128, 128
      %220 = vsyncadd [#allocation4], %s219
      %s222 = sshll.u32 [#allocation7], 4
      %s223 = int_to_ptr.vmem [resolvable:$true] %s222
      %225 = dma.vmem_to_hbm [thread:$0]  %s223, 128, %s2, [#allocation4]
    $region21: #{tpu_custom_call.1} parent=1 // pred_fallthru
      _
    // Predicated region
    $region22: #{tpu_custom_call.1} parent=1 // pred_check
      _
    $region23: #{tpu_custom_call.1} parent=1 // pred_check_branch
      %227 = sbr.rel (0) target = $region25
    $region24: #{tpu_custom_call.1} parent=1 // pred_region
      %228 = dma.done [#allocation4], 128
    $region25: #{tpu_custom_call.1} parent=1 // pred_fallthru
      _
    %229 = vsyncpa [#allocation3], 1
    %230 = vsyncpa [#allocation6], 1
    %231 = vsyncpa [#allocation4], 1

</llo_original>
